<compile_context>
chip_gen: v7x
topology: tpu7x:2x2x1
jax: 0.10.0
libtpu: 0.0.40
codegen_flags: <defaults>
</compile_context>

<pallas_src>
import jax
import jax.numpy as jnp
from jax.experimental import pallas as pl
from jax.experimental.pallas import tpu as pltpu


def _scaled_tanh_kernel(a_ref, x_ref, o_ref):
    # a_ref: (1,) f32 scalar in SMEM (scalar prefetch).
    # x_ref / o_ref: (block_rows, lanes) VMEM tiles.
    a = a_ref[0]
    o_ref[...] = jnp.tanh(x_ref[...].astype(jnp.float32) * a).astype(o_ref.dtype)


# Inputs smaller than this go through plain XLA (pallas_call setup overhead
# dominates at this size; plain tanh is already at the HBM roofline there).
_SMALL_INPUT_BYTES = 128 * 1024


def scaled_tanh(x: jax.Array, a=1.0, *, force_pallas: bool = False) -> jax.Array:
    """Pallas implementation of ScaledTanh.forward: tanh(x * a)."""
    orig_shape = x.shape
    n = x.size
    itemsize = jnp.dtype(x.dtype).itemsize

    # --- Small / awkward-size fast path --------------------------------------
    if not force_pallas and (n * itemsize < _SMALL_INPUT_BYTES or n % 128 != 0):
        return jnp.tanh(x * a)

    # --- Lane-dense 2-D view (no padding on the common path) -----------------
    lanes = 128
    for cand in (1024, 512, 256, 128):
        if n % cand == 0:
            lanes = cand
            break

    x_flat = x.reshape(-1)
    pad = 0
    if n % lanes != 0:  # only reachable when force_pallas=True on odd sizes
        lanes = 128
        pad = (-n) % lanes
        x_flat = jnp.pad(x_flat, (0, pad))
    total = n + pad
    rows = total // lanes
    x2d = x_flat.reshape(rows, lanes)

    # --- Dtype-aware sublane alignment ---------------------------------------
    sub = max(8, (8 * 4) // itemsize)          # f32: 8, bf16: 16, int8/fp8: 32

    # --- Block size: target ~4 MiB per tile (safe on v7x's 64 MiB VMEM) ------
    target_block_bytes = 4 * 1024 * 1024
    target_block_rows = max(sub, (target_block_bytes // (lanes * itemsize)) // sub * sub)
    block_rows = rows if rows <= target_block_rows else target_block_rows

    # --- Keep the grid even for v7x's two TensorCores ------------------------
    block_bytes = block_rows * lanes * itemsize
    grid_steps = -(-rows // block_rows)
    if block_bytes >= (1 << 20) and grid_steps < 8 and grid_steps % 2 == 1:
        br = -(-rows // (grid_steps + 1))      # split into an even step count
        br = -(-br // sub) * sub               # keep sublane alignment
        if br >= sub:
            block_rows = br
            grid_steps = -(-rows // block_rows)
    grid = (grid_steps,)

    a_arr = jnp.asarray(a, dtype=jnp.float32).reshape(1)

    out2d = pl.pallas_call(
        _scaled_tanh_kernel,
        out_shape=jax.ShapeDtypeStruct((rows, lanes), x2d.dtype),
        grid_spec=pltpu.PrefetchScalarGridSpec(
            num_scalar_prefetch=1,
            grid=grid,
            in_specs=[pl.BlockSpec((block_rows, lanes), lambda i, a_ref: (i, 0))],
            out_specs=pl.BlockSpec((block_rows, lanes), lambda i, a_ref: (i, 0)),
        ),
        compiler_params=pltpu.CompilerParams(
            dimension_semantics=("parallel",),
            vmem_limit_bytes=32 * 1024 * 1024,  # > v5e's 16 MiB scoped default
        ),
        cost_estimate=pl.CostEstimate(
            flops=n, transcendentals=n, bytes_accessed=2 * n * itemsize),
    )(a_arr, x2d)

    out_flat = out2d.reshape(-1)
    if pad:
        out_flat = out_flat[:n]
    return out_flat.reshape(orig_shape)


if __name__ == "__main__":
    key = jax.random.PRNGKey(0)
    a = 1.5  # ScaledTanh(a=1.5); module default is a=1

    # Small NCHW activation consistent with the module: batch=2, C=4, H=W=16.
    x = jax.random.normal(key, (2, 4, 16, 16), dtype=jnp.float32)
    y_ref = jnp.tanh(x * a)

    # Exercise the Pallas kernel explicitly (small inputs would otherwise take
    # the XLA fast path).
    y = scaled_tanh(x, a, force_pallas=True)
    jax.block_until_ready(y)
    assert y.shape == x.shape and y.dtype == x.dtype
    assert jnp.allclose(y, y_ref, atol=1e-6, rtol=1e-6)

    # Default dispatch (small-input fast path) must match as well.
    y2 = scaled_tanh(x, a)
    jax.block_until_ready(y2)
    assert jnp.allclose(y2, y_ref, atol=1e-6, rtol=1e-6)

    print("KERNEL_OK")
</pallas_src>

<mosaic_0001>
module attributes {stable_mosaic.version = 11 : i64} {
  func.func @_scaled_tanh_kernel(%arg0: i32, %arg1: memref<1xf32, #tpu.memory_space<smem>>, %arg2: memref<2x1024xf32, #tpu.memory_space<vmem>>, %arg3: memref<2x1024xf32, #tpu.memory_space<vmem>>) attributes {dimension_semantics = [#tpu.dimension_semantics<parallel>], iteration_bounds = array<i64: 1>, scalar_prefetch = 1 : i64, scratch_operands = 0 : i64, tpu.core_type = #tpu.core_type<tc>, window_params = [{transform_indices = @transform_0, window_bounds = array<i64: 2, 1024>}, {transform_indices = @transform_1, window_bounds = array<i64: 2, 1024>}]} {
    %c0 = arith.constant 0 : index
    %0 = memref.load %arg1[%c0] : memref<1xf32, #tpu.memory_space<smem>>
    %c0_0 = arith.constant 0 : index
    %c0_1 = arith.constant 0 : index
    %1 = vector.load %arg2[%c0_0, %c0_1] : memref<2x1024xf32, #tpu.memory_space<vmem>>, vector<2x1024xf32>
    %2 = vector.broadcast %0 : f32 to vector<2x1024xf32>
    %3 = arith.mulf %1, %2 : vector<2x1024xf32>
    %4 = math.tanh %3 : vector<2x1024xf32>
    %c0_2 = arith.constant 0 : index
    %c0_3 = arith.constant 0 : index
    %5 = vector.load %arg3[%c0_2, %c0_3] : memref<2x1024xf32, #tpu.memory_space<vmem>>, vector<2x1024xf32>
    tpu.vector_store %arg3[%c0_2, %c0_3], %4 {strides = array<i32>} : memref<2x1024xf32, #tpu.memory_space<vmem>>, vector<2x1024xf32>,
    return
  }
  func.func @transform_0(%arg0: i32, %arg1: memref<1xf32, #tpu.memory_space<smem>>) -> (i32, i32) {
    %c0_i32 = arith.constant 0 : i32
    %c0_i32_0 = arith.constant 0 : i32
    return %arg0, %c0_i32 : i32, i32
  }
  func.func @transform_1(%arg0: i32, %arg1: memref<1xf32, #tpu.memory_space<smem>>) -> (i32, i32) {
    %c0_i32 = arith.constant 0 : i32
    %c0_i32_0 = arith.constant 0 : i32
    return %arg0, %c0_i32 : i32, i32
  }
}

</mosaic_0001>

<llo_original>
// kernel: tpu_custom_call.1
$region0: #{tpu_custom_call.1}
  #allocation0 [shape = 'u32[]', space=smem, size = 0x4, offset = 0x4, fixed_abs, tag = 'smem constant byte address 0x4 - core index']
  #allocation1 [shape = 'u32[144,128]{1,0:T(1,128)}', space=vmem, size = 0x12000, scoped, tag = 'internal scratch']
  #allocation2 [shape = 's32[1]{0}', space=sflag, size = 0x4, scoped, tag = 'scoped memory for tpu_custom_call.1']
  #allocation3 [shape = 'f32[1]{0:T(128)S(6)}', space=smem, size = 0x200, scoped, tag = 'prefetched SMEM operand 0']
  %s0 = inlined_call_operand.<no memory space> [shape: f32[1], index: 0, kind: input, shape index: {}]
  %s1 = inlined_call_operand.hbm [shape: f32[2,1024], index: 1, kind: input, shape index: {}]
  %s2 = inlined_call_operand.hbm [shape: f32[2,1024], index: 2, kind: output, shape index: {}]
  %s3 = sld [smem:[#allocation0]]
  $region18: #{tpu_custom_call.1} parent=0
    _
  %s5 = ssub.s32 1, %s3
  %s6 = scalar_select 0, %s5, %s3
  %7 = sst [smem:[#allocation3]] %s0
  $region1: #{tpu_custom_call.1} parent=0
    #allocation4 [shape = 'u8[8192]{0}', space=vmem, size = 0x2000, scoped, tag = 'input window, operand 1, single buffered']
    #allocation5 [shape = 's32[1]{0}', space=sflag, size = 0x4, scoped, tag = 'scoped memory for tpu_custom_call.1']
    #allocation6 [shape = 's32[1]{0}', space=sflag, size = 0x4, scoped, tag = 'scoped memory for tpu_custom_call.1']
    #allocation7 [shape = 'u8[8192]{0}', space=vmem, size = 0x2000, scoped, tag = 'output window, operand 0, single buffered']
    %8 = vsyncpa [#allocation5], 0
    %9 = vsyncpa [#allocation6], 0
    // Predicated region
    $region2: #{tpu_custom_call.1} parent=1 // pred_check
      _
    $region3: #{tpu_custom_call.1} parent=1 // pred_check_branch
      %11 = sbr.rel (0) target = $region5
    $region4: #{tpu_custom_call.1} parent=1 // pred_region
      %s13 = ssub.s32 256, 256
      %14 = vsyncadd [#allocation5], %s13
      %s16 = sshll.u32 [#allocation4], 4
      %s17 = int_to_ptr.vmem [resolvable:$true] %s16
      %19 = dma.hbm_to_vmem [thread:$0]  %s1, 256, %s17, [#allocation5]
    $region5: #{tpu_custom_call.1} parent=1 // pred_fallthru
      _
    // Predicated region
    $region6: #{tpu_custom_call.1} parent=1 // pred_check
      _
    $region7: #{tpu_custom_call.1} parent=1 // pred_check_branch
      %21 = sbr.rel (0) target = $region9
    $region8: #{tpu_custom_call.1} parent=1 // pred_region
      %22 = dma.done [#allocation5], 256
    $region9: #{tpu_custom_call.1} parent=1 // pred_fallthru
      _
    %s23 = sld [smem:[#allocation3]]
    %v24 = vld [vmem:[#allocation4] sm:$0xff]
    %v25 = vld [vmem:[#allocation4 + $0x8] sm:$0xff]
    %v26 = vstv %s23
    %v27 = vmul.f32 %v24, %v26
    %v28 = vmul.f32 %v25, %v26
    %v29 = vtanh.pop %v27
    %v30 = vtanh.pop %v28
    %31 = vst [vmem:[#allocation7] sm:$0xff] %v29
    %32 = vst [vmem:[#allocation7 + $0x8] sm:$0xff] %v30
    // Predicated region
    $region10: #{tpu_custom_call.1} parent=1 // pred_check
      _
    $region11: #{tpu_custom_call.1} parent=1 // pred_check_branch
      %34 = sbr.rel (0) target = $region13
    $region12: #{tpu_custom_call.1} parent=1 // pred_region
      %s36 = ssub.s32 256, 256
      %37 = vsyncadd [#allocation6], %s36
      %s39 = sshll.u32 [#allocation7], 4
      %s40 = int_to_ptr.vmem [resolvable:$true] %s39
      %42 = dma.vmem_to_hbm [thread:$0]  %s40, 256, %s2, [#allocation6]
    $region13: #{tpu_custom_call.1} parent=1 // pred_fallthru
      _
    // Predicated region
    $region14: #{tpu_custom_call.1} parent=1 // pred_check
      _
    $region15: #{tpu_custom_call.1} parent=1 // pred_check_branch
      %44 = sbr.rel (0) target = $region17
    $region16: #{tpu_custom_call.1} parent=1 // pred_region
      %45 = dma.done [#allocation6], 256
    $region17: #{tpu_custom_call.1} parent=1 // pred_fallthru
      _
    %46 = vsyncpa [#allocation5], 1
    %47 = vsyncpa [#allocation6], 1

</llo_original>
